<compile_context>
chip_gen: v7x
topology: tpu7x:2x2x1
jax: 0.10.0
libtpu: 0.0.40
codegen_flags: <defaults>
</compile_context>

<pallas_src>
import functools

import jax
import jax.numpy as jnp
from jax import lax
from jax.experimental import pallas as pl
from jax.experimental.pallas import tpu as pltpu


def _get_loss_kernel(scale_ref, pred_ref, target_ref, trans_ref, out_ref, acc_ref,
                     *, batch):
    b = pl.program_id(0)
    tb, d = trans_ref.shape[0], trans_ref.shape[1]

    @pl.when(b == 0)
    def _init():
        acc_ref[0, 0] = 0.0

    pred = pred_ref[...].astype(jnp.float32)   # (tb, K) log-probabilities
    tgt = target_ref[...]                      # (tb, 1) i32 labels
    trans = trans_ref[...]                     # (tb, d, d) native dtype for the MXU
    K = pred.shape[1]

    # Rows that belong to the real batch (masks the padded tail of a partial block).
    row_ids = b * tb + lax.broadcasted_iota(jnp.int32, (tb, 1), 0)
    row_valid = row_ids < batch                                        # (tb, 1)

    # ---- NLL numerator: sum_b pred[b, target[b]] (single masked reduction) ----
    class_ids = lax.broadcasted_iota(jnp.int32, (tb, K), 1)            # (tb, K)
    picked_sum = jnp.sum(jnp.where((class_ids == tgt) & row_valid, pred, 0.0))

    # ---- regularizer numerator: sum_b ||T_b T_b^T - I||_F ----
    gram = jnp.einsum('bij,bkj->bik', trans, trans,
                      preferred_element_type=jnp.float32)              # (tb, d, d) f32, MXU
    eye = (lax.broadcasted_iota(jnp.int32, (d, d), 0) ==
           lax.broadcasted_iota(jnp.int32, (d, d), 1)).astype(jnp.float32)
    diff = gram - eye[None]                                            # one VPU sub, free
    fro = jnp.sqrt(jnp.sum(jnp.sum(diff * diff, axis=2), axis=1,
                           keepdims=True))                             # (tb, 1)
    fro_sum = jnp.sum(jnp.where(row_valid, fro, 0.0))

    # ---- accumulate fused partial scalar: scale * fro_sum - picked_sum ----
    acc_ref[0, 0] += scale_ref[0] * fro_sum - picked_sum

    @pl.when(b == pl.num_programs(0) - 1)
    def _finalize():
        out_ref[0, 0] = acc_ref[0, 0] / jnp.float32(batch)


def _pick_batch_tile(B, d, K, itemsize):
    """Largest batch tile that keeps the block footprint comfortably inside the
    tightest VMEM budget (v7x: 64 MiB physical / 32 MiB scoped default)."""
    # per batch row: double-buffered trans block + ~2 f32 (d,d) intermediates
    # (gram, diff) + double-buffered pred block + target.
    per_row = d * d * itemsize * 2 + d * d * 4 * 2 + K * 4 * 2 + 8
    budget = 8 * 1024 * 1024
    tb = max(1, min(B, budget // per_row))
    if tb < B:
        tb = max(8, (tb // 8) * 8)   # sublane-aligned blocks when actually tiling
    return min(tb, B)


def get_loss(pred, target, trans_feat, mat_diff_loss_scale=0.001):
    """Pallas equivalent of the PyTorch `get_loss.forward`."""
    B, K = pred.shape
    d = trans_feat.shape[1]
    target2d = target.reshape(B, 1).astype(jnp.int32)
    scale_arr = jnp.asarray([mat_diff_loss_scale], dtype=jnp.float32)

    tb = _pick_batch_tile(B, d, K, trans_feat.dtype.itemsize)
    num_blocks = pl.cdiv(B, tb)

    cost = pl.CostEstimate(
        flops=2 * B * d * d * d + 4 * B * d * d + 2 * B * K,
        transcendentals=B,   # one sqrt per batch row
        bytes_accessed=(pred.nbytes + target2d.nbytes + trans_feat.nbytes
                        + scale_arr.nbytes + 4),
    )

    out = pl.pallas_call(
        functools.partial(_get_loss_kernel, batch=B),
        out_shape=jax.ShapeDtypeStruct((1, 1), jnp.float32),
        grid=(num_blocks,),
        in_specs=[
            pl.BlockSpec(memory_space=pltpu.MemorySpace.SMEM),       # scale (runtime scalar)
            pl.BlockSpec((tb, K), lambda b: (b, 0)),                 # pred
            pl.BlockSpec((tb, 1), lambda b: (b, 0)),                 # target
            pl.BlockSpec((tb, d, d), lambda b: (b, 0, 0)),           # trans_feat
        ],
        out_specs=pl.BlockSpec(memory_space=pltpu.MemorySpace.SMEM),
        scratch_shapes=[pltpu.SMEM((1, 1), jnp.float32)],            # running scalar accum
        compiler_params=pltpu.CompilerParams(
            dimension_semantics=("arbitrary",)),                     # shared accumulator
        cost_estimate=cost,
    )(scale_arr, pred, target2d, trans_feat)   # native dtypes: no wrapper up-cast
    return out[0, 0]


def _reference(pred, target, trans_feat, scale=0.001):
    # Pure-JAX reference for correctness checking.
    pred32 = pred.astype(jnp.float32)
    tf32 = trans_feat.astype(jnp.float32)
    picked = jnp.take_along_axis(pred32, target[:, None].astype(jnp.int32), axis=1)
    nll = -jnp.mean(picked)
    d = tf32.shape[1]
    gram = jnp.einsum('bij,bkj->bik', tf32, tf32)
    diff = gram - jnp.eye(d, dtype=jnp.float32)[None]
    fro = jnp.sqrt(jnp.sum(diff * diff, axis=(1, 2)))
    return nll + jnp.mean(fro) * scale


if __name__ == "__main__":
    key = jax.random.PRNGKey(0)
    k1, k2, k3 = jax.random.split(key, 3)

    B, K, d = 4, 16, 8  # small shapes: batch, num_classes, feature-transform dim

    # pred: log-softmax outputs (B, K)
    logits = jax.random.normal(k1, (B, K), dtype=jnp.float32)
    pred = jax.nn.log_softmax(logits, axis=-1)
    # target: integer class labels (B,)
    target = jax.random.randint(k2, (B,), 0, K, dtype=jnp.int32)
    # trans_feat: feature transform matrices (B, d, d)
    trans_feat = jax.random.normal(k3, (B, d, d), dtype=jnp.float32) * 0.1

    out = get_loss(pred, target, trans_feat)
    out = jax.block_until_ready(out)

    ref = _reference(pred, target, trans_feat)
    assert jnp.allclose(out, ref, rtol=1e-5, atol=1e-5), (out, ref)
    print("KERNEL_OK")
</pallas_src>

<mosaic_0001>
module attributes {stable_mosaic.version = 11 : i64} {
  func.func @_get_loss_kernel(%arg0: i32, %arg1: memref<1xf32, #tpu.memory_space<smem>>, %arg2: memref<4x16xf32, #tpu.memory_space<vmem>>, %arg3: memref<4x1xi32, #tpu.memory_space<vmem>>, %arg4: memref<4x8x8xf32, #tpu.memory_space<vmem>>, %arg5: memref<1x1xf32, #tpu.memory_space<smem>>, %arg6: memref<1x1xf32, #tpu.memory_space<smem>>) attributes {dimension_semantics = [#tpu.dimension_semantics<arbitrary>], iteration_bounds = array<i64: 1>, scalar_prefetch = 0 : i64, scratch_operands = 1 : i64, tpu.core_type = #tpu.core_type<tc>, window_params = [{transform_indices = @transform_0, window_bounds = array<i64: 1>}, {transform_indices = @transform_1, window_bounds = array<i64: 4, 16>}, {transform_indices = @transform_2, window_bounds = array<i64: 4, 1>}, {transform_indices = @transform_3, window_bounds = array<i64: 4, 8, 8>}, {transform_indices = @transform_4, window_bounds = array<i64: 1, 1>}]} {
    %c0_i32 = arith.constant 0 : i32
    %0 = arith.cmpi eq, %arg0, %c0_i32 : i32
    %1 = arith.extui %0 : i1 to i32
    %c0_i32_0 = arith.constant 0 : i32
    %2 = arith.cmpi ne, %1, %c0_i32_0 : i32
    scf.if %2 {
      %cst_21 = arith.constant 0.000000e+00 : f32
      %c0_22 = arith.constant 0 : index
      %c0_23 = arith.constant 0 : index
      %52 = memref.load %arg6[%c0_22, %c0_23] : memref<1x1xf32, #tpu.memory_space<smem>>
      memref.store %cst_21, %arg6[%c0_22, %c0_23] : memref<1x1xf32, #tpu.memory_space<smem>>
    } else {
    }
    %c0 = arith.constant 0 : index
    %c0_1 = arith.constant 0 : index
    %3 = vector.load %arg2[%c0, %c0_1] : memref<4x16xf32, #tpu.memory_space<vmem>>, vector<4x16xf32>
    %c0_2 = arith.constant 0 : index
    %c0_3 = arith.constant 0 : index
    %4 = vector.load %arg3[%c0_2, %c0_3] : memref<4x1xi32, #tpu.memory_space<vmem>>, vector<4x1xi32>
    %c0_4 = arith.constant 0 : index
    %c0_5 = arith.constant 0 : index
    %c0_6 = arith.constant 0 : index
    %5 = vector.load %arg4[%c0_4, %c0_5, %c0_6] : memref<4x8x8xf32, #tpu.memory_space<vmem>>, vector<4x8x8xf32>
    %c4_i32 = arith.constant 4 : i32
    %6 = arith.muli %arg0, %c4_i32 : i32
    %7 = tpu.iota {dimensions = array<i32: 0>} : vector<4x1xi32>
    %8 = vector.broadcast %6 : i32 to vector<4x1xi32>
    %9 = arith.addi %8, %7 : vector<4x1xi32>
    %c4_i32_7 = arith.constant 4 : i32
    %10 = vector.broadcast %c4_i32_7 : i32 to vector<4x1xi32>
    %11 = arith.cmpi slt, %9, %10 : vector<4x1xi32>
    %12 = tpu.iota {dimensions = array<i32: 1>} : vector<4x16xi32>
    %13 = vector.broadcast %4 : vector<4x1xi32> to vector<4x16xi32>
    %14 = arith.cmpi eq, %12, %13 : vector<4x16xi32>
    %15 = vector.broadcast %11 : vector<4x1xi1> to vector<4x16xi1>
    %16 = arith.andi %14, %15 : vector<4x16xi1>
    %cst = arith.constant 0.000000e+00 : f32
    %17 = vector.broadcast %cst : f32 to vector<4x16xf32>
    %18 = arith.select %16, %3, %17 : vector<4x16xi1>, vector<4x16xf32>
    %19 = vector.shape_cast %18 : vector<4x16xf32> to vector<1x4x16xf32>
    %cst_8 = arith.constant dense<0.000000e+00> : vector<1xf32>
    %20 = vector.multi_reduction <add>, %19, %cst_8 [1, 2] : vector<1x4x16xf32> to vector<1xf32>
    %21 = vector.shape_cast %20 : vector<1xf32> to vector<1x1x1xf32>
    %22 = vector.extract %21[0, 0, 0] : f32 from vector<1x1x1xf32>
    "tpu.trace_start"() <{level = 10 : i32, message = "bij,bkj->bik"}> : () -> ()
    %cst_9 = arith.constant dense<0.000000e+00> : vector<4x8x8xf32>
    %23 = tpu.matmul %5, %5, %cst_9 {dimension_numbers = #tpu.dot_dimension_numbers<[2], [2], [1], [1], [0, 0, 0, 1, 1, 1], [0], [0]>} : vector<4x8x8xf32>, vector<4x8x8xf32>, vector<4x8x8xf32> -> vector<4x8x8xf32>
    "tpu.trace_stop"() : () -> ()
    %24 = tpu.iota {dimensions = array<i32: 0>} : vector<8x8xi32>
    %25 = tpu.iota {dimensions = array<i32: 1>} : vector<8x8xi32>
    %26 = arith.cmpi eq, %24, %25 : vector<8x8xi32>
    %27 = arith.extui %26 : vector<8x8xi1> to vector<8x8xi32>
    %28 = arith.sitofp %27 : vector<8x8xi32> to vector<8x8xf32>
    %29 = vector.shape_cast %28 : vector<8x8xf32> to vector<1x8x8xf32>
    %30 = vector.broadcast %29 : vector<1x8x8xf32> to vector<4x8x8xf32>
    %31 = arith.subf %23, %30 : vector<4x8x8xf32>
    %32 = arith.mulf %31, %31 : vector<4x8x8xf32>
    %cst_10 = arith.constant dense<0.000000e+00> : vector<4x8xf32>
    %33 = vector.multi_reduction <add>, %32, %cst_10 [2] : vector<4x8x8xf32> to vector<4x8xf32>
    %cst_11 = arith.constant dense<0.000000e+00> : vector<4xf32>
    %34 = vector.multi_reduction <add>, %33, %cst_11 [1] : vector<4x8xf32> to vector<4xf32>
    %35 = vector.shape_cast %34 : vector<4xf32> to vector<4x1xf32>
    %36 = math.sqrt %35 : vector<4x1xf32>
    %cst_12 = arith.constant 0.000000e+00 : f32
    %37 = vector.broadcast %cst_12 : f32 to vector<4x1xf32>
    %38 = arith.select %11, %36, %37 : vector<4x1xi1>, vector<4x1xf32>
    %39 = vector.shape_cast %38 : vector<4x1xf32> to vector<1x4x1xf32>
    %cst_13 = arith.constant dense<0.000000e+00> : vector<1xf32>
    %40 = vector.multi_reduction <add>, %39, %cst_13 [1, 2] : vector<1x4x1xf32> to vector<1xf32>
    %41 = vector.shape_cast %40 : vector<1xf32> to vector<1x1x1xf32>
    %42 = vector.extract %41[0, 0, 0] : f32 from vector<1x1x1xf32>
    %c0_14 = arith.constant 0 : index
    %c0_15 = arith.constant 0 : index
    %43 = memref.load %arg6[%c0_14, %c0_15] : memref<1x1xf32, #tpu.memory_space<smem>>
    %c0_16 = arith.constant 0 : index
    %44 = memref.load %arg1[%c0_16] : memref<1xf32, #tpu.memory_space<smem>>
    %45 = arith.mulf %44, %42 : f32
    %46 = arith.subf %45, %22 : f32
    %47 = arith.addf %43, %46 : f32
    %c0_17 = arith.constant 0 : index
    %c0_18 = arith.constant 0 : index
    %48 = memref.load %arg6[%c0_17, %c0_18] : memref<1x1xf32, #tpu.memory_space<smem>>
    memref.store %47, %arg6[%c0_17, %c0_18] : memref<1x1xf32, #tpu.memory_space<smem>>
    %c0_i32_19 = arith.constant 0 : i32
    %49 = arith.cmpi eq, %arg0, %c0_i32_19 : i32
    %50 = arith.extui %49 : i1 to i32
    %c0_i32_20 = arith.constant 0 : i32
    %51 = arith.cmpi ne, %50, %c0_i32_20 : i32
    scf.if %51 {
      %c0_21 = arith.constant 0 : index
      %c0_22 = arith.constant 0 : index
      %52 = memref.load %arg6[%c0_21, %c0_22] : memref<1x1xf32, #tpu.memory_space<smem>>
      %cst_23 = arith.constant 4.000000e+00 : f32
      %53 = arith.divf %52, %cst_23 : f32
      %c0_24 = arith.constant 0 : index
      %c0_25 = arith.constant 0 : index
      %54 = memref.load %arg5[%c0_24, %c0_25] : memref<1x1xf32, #tpu.memory_space<smem>>
      memref.store %53, %arg5[%c0_24, %c0_25] : memref<1x1xf32, #tpu.memory_space<smem>>
    } else {
    }
    return
  }
  func.func @transform_0(%arg0: i32) -> i32 {
    %c0_i32 = arith.constant 0 : i32
    %c0_i32_0 = arith.constant 0 : i32
    return %c0_i32 : i32
  }
  func.func @transform_1(%arg0: i32) -> (i32, i32) {
    %c0_i32 = arith.constant 0 : i32
    %c0_i32_0 = arith.constant 0 : i32
    return %arg0, %c0_i32 : i32, i32
  }
  func.func @transform_2(%arg0: i32) -> (i32, i32) {
    %c0_i32 = arith.constant 0 : i32
    %c0_i32_0 = arith.constant 0 : i32
    return %arg0, %c0_i32 : i32, i32
  }
  func.func @transform_3(%arg0: i32) -> (i32, i32, i32) {
    %c0_i32 = arith.constant 0 : i32
    %c0_i32_0 = arith.constant 0 : i32
    %c0_i32_1 = arith.constant 0 : i32
    return %arg0, %c0_i32, %c0_i32_0 : i32, i32, i32
  }
  func.func @transform_4(%arg0: i32) -> (i32, i32) {
    %c0_i32 = arith.constant 0 : i32
    %c0_i32_0 = arith.constant 0 : i32
    %c0_i32_1 = arith.constant 0 : i32
    return %c0_i32, %c0_i32_0 : i32, i32
  }
}

</mosaic_0001>

<llo_original>
// kernel: tpu_custom_call.1
$region0: #{tpu_custom_call.1}
  #allocation0 [shape = 'u32[]', space=smem, size = 0x4, offset = 0x4, fixed_abs, tag = 'smem constant byte address 0x4 - core index']
  #allocation1 [shape = 'u32[144,128]{1,0:T(1,128)}', space=vmem, size = 0x12000, scoped, tag = 'internal scratch']
  #allocation2 [shape = 'f32[1,1]{1,0:T(1,128)}', space=smem, size = 0x200, scoped, tag = 'scratch operand']
  #allocation3 [shape = 'f32[1]{0:T(128)S(6)}', space=smem, size = 0x200, scoped, tag = 'scoped memory for tpu_custom_call.1']
  %s0 = inlined_call_operand.<no memory space> [shape: f32[1], index: 0, kind: input, shape index: {}]
  %s1 = inlined_call_operand.vmem [shape: f32[4,16], index: 1, kind: input, shape index: {}]
  %s2 = inlined_call_operand.vmem [shape: s32[4,1], index: 2, kind: input, shape index: {}]
  %s3 = inlined_call_operand.hbm [shape: f32[4,8,8], index: 3, kind: input, shape index: {}]
  %s4 = inlined_call_operand.hbm [shape: f32[1,1], index: 4, kind: output, shape index: {}]
  %s5 = sld [smem:[#allocation0]]
  $region38: #{tpu_custom_call.1} parent=0
    _
  %s7 = ssub.s32 1, %s5
  %s8 = scalar_select 0, %s7, %s5
  %9 = sst [smem:[#allocation3]] %s0
  $region1: #{tpu_custom_call.1} parent=0
    #allocation4 [shape = 'u8[16384]{0}', space=vmem, size = 0x4000, scoped, tag = 'input window, operand 3, single buffered']
    #allocation5 [shape = 's32[1]{0}', space=sflag, size = 0x4, scoped, tag = 'scoped memory for tpu_custom_call.1']
    #allocation6 [shape = 's32[1]{0}', space=sflag, size = 0x4, scoped, tag = 'scoped memory for tpu_custom_call.1']
    #allocation7 [shape = 'u8[512]{0}', space=smem, size = 0x200, scoped, tag = 'output window, operand 0, single buffered']
    %10 = vsyncpa [#allocation5], 0
    %11 = vsyncpa [#allocation6], 0
    // Predicated region
    $region2: #{tpu_custom_call.1} parent=1 // pred_check
      _
    $region3: #{tpu_custom_call.1} parent=1 // pred_check_branch
      %13 = sbr.rel (0) target = $region5
    $region4: #{tpu_custom_call.1} parent=1 // pred_region
      _
    $region5: #{tpu_custom_call.1} parent=1 // pred_fallthru
      _
    // Predicated region
    $region6: #{tpu_custom_call.1} parent=1 // pred_check
      _
    $region7: #{tpu_custom_call.1} parent=1 // pred_check_branch
      %15 = sbr.rel (0) target = $region9
    $region8: #{tpu_custom_call.1} parent=1 // pred_region
      _
    $region9: #{tpu_custom_call.1} parent=1 // pred_fallthru
      _
    // Predicated region
    $region10: #{tpu_custom_call.1} parent=1 // pred_check
      _
    $region11: #{tpu_custom_call.1} parent=1 // pred_check_branch
      %17 = sbr.rel (0) target = $region13
    $region12: #{tpu_custom_call.1} parent=1 // pred_region
      _
    $region13: #{tpu_custom_call.1} parent=1 // pred_fallthru
      _
    // Predicated region
    $region14: #{tpu_custom_call.1} parent=1 // pred_check
      _
    $region15: #{tpu_custom_call.1} parent=1 // pred_check_branch
      %19 = sbr.rel (0) target = $region17
    $region16: #{tpu_custom_call.1} parent=1 // pred_region
      %s21 = ssub.s32 512, 512
      %22 = vsyncadd [#allocation5], %s21
      %s23 = sshll.u32 [#allocation4], 4
      %s24 = int_to_ptr.vmem [resolvable:$true] %s23
      %29 = dma.hbm_to_vmem [thread:$0]  %s3, 512, %s24, [#allocation5], 128, 128, 8
    $region17: #{tpu_custom_call.1} parent=1 // pred_fallthru
      _
    // Predicated region
    $region18: #{tpu_custom_call.1} parent=1 // pred_check
      _
    $region19: #{tpu_custom_call.1} parent=1 // pred_check_branch
      %31 = sbr.rel (0) target = $region21
    $region20: #{tpu_custom_call.1} parent=1 // pred_region
      %32 = dma.done [#allocation5], 512
    $region21: #{tpu_custom_call.1} parent=1 // pred_fallthru
      _
    %p33 = scmp.eq.s32.totalorder 0, 0
    // Predicated region
    $region22: #{tpu_custom_call.1} parent=1 // pred_check
      %p34 = pneg %p33
    $region23: #{tpu_custom_call.1} parent=1 // pred_check_branch
      %36 = sbr.rel (%p34) target = $region25
    $region24: #{tpu_custom_call.1} parent=1 // pred_region
      %s37 = scalar_lea.smem [#allocation2], 0
      %38 = sst [smem:[%s37]] 0.0
    $region25: #{tpu_custom_call.1} parent=1 // pred_fallthru
      _
    %v39 = vld [vmem:[%s1] sm:$0xf]
    %v40 = vld [vmem:[%s2] sm:$0xf]
    %v41 = vld [vmem:[#allocation4] sm:$0xff]
    %v42 = vld [vmem:[#allocation4 + $0x8] sm:$0xff]
    %v43 = vld [vmem:[#allocation4 + $0x10] sm:$0xff]
    %v44 = vld [vmem:[#allocation4 + $0x18] sm:$0xff]
    %s45 = smul.u32 0, 4
    %v46 = vlaneseq
    %v47 = vshrl.u32 %v46, 7
    %v48 = vstv %s45
    %v49 = vadd.s32 %v48, %v47
    %vm50 = vcmp.lt.s32.totalorder %v49, 4
    %v51 = vlaneseq
    %v52 = vand.u32 %v51, 127
    %53 = vset.pattern.permute.xlu0 0
    %54 = vperm.xlu0 %53, %v40
    %v55 = vpop.permute.xlu0 %54
    %vm56 = vcmp.eq.s32.totalorder %v52, %v55
    %v57 = vsel %vm50, 1, 0
    %vm58 = vcmp.eq.s32.totalorder %v57, 1
    %vm59 = vmand %vm56, %vm58
    %v60 = vsel %vm59, %v39, 0.0
    %vm61 = vcmask 125952
    %v62 = vsel %vm61, %v60, 0.0
    %63 = vadd.xlane.f32.xlu0 %v62
    %v64 = vpop.xlane.xlu0 %63
    %v65 = vrot.slane %v64, 4
    %v66 = vadd.f32 %v64, %v65
    %v67 = vrot.slane %v66, 2
    %v68 = vadd.f32 %v66, %v67
    %v69 = vrot.slane %v68, 1
    %v70 = vadd.f32 %v68, %v69
    %s71 = vtos %v70
    %vm72 = vcmask 64512
    %v74 = vsel %vm72, %v41, 0
    %76 = vmatprep.subr.mxu0 0.0
    %77 = vmatpush1.xpose.msra.mxu0 %v74
    %78 = vmatprep.subr.mxu0 0.0
    %79 = vmatpush1.xpose.msra.mxu0 0.0
    %80 = vmatprep.subr.mxu0 0.0
    %81 = vmatpush1.xpose.msra.mxu0 0.0
    %82 = vmatprep.subr.mxu0 0.0
    %83 = vmatpush1.xpose.msra.mxu0 0.0
    %84 = vmatprep.subr.mxu0 0.0
    %85 = vmatpush1.xpose.msra.mxu0 0.0
    %86 = vmatprep.subr.mxu0 0.0
    %87 = vmatpush1.xpose.msra.mxu0 0.0
    %88 = vmatprep.subr.mxu0 0.0
    %89 = vmatpush1.xpose.msra.mxu0 0.0
    %90 = vmatprep.subr.mxu0 0.0
    %91 = vmatpush1.xpose.msra.mxu0 0.0
    %92 = vmatprep.subr.mxu0 0.0
    %93 = vmatpush1.xpose.msra.mxu0 0.0
    %94 = vmatprep.subr.mxu0 0.0
    %95 = vmatpush1.xpose.msra.mxu0 0.0
    %96 = vmatprep.subr.mxu0 0.0
    %97 = vmatpush1.xpose.msra.mxu0 0.0
    %98 = vmatprep.subr.mxu0 0.0
    %99 = vmatpush1.xpose.msra.mxu0 0.0
    %100 = vmatprep.subr.mxu0 0.0
    %101 = vmatpush1.xpose.msra.mxu0 0.0
    %102 = vmatprep.subr.mxu0 0.0
    %103 = vmatpush1.xpose.msra.mxu0 0.0
    %104 = vmatprep.subr.mxu0 0.0
    %105 = vmatpush1.xpose.msra.mxu0 0.0
    %106 = vmatprep.subr.mxu0 0.0
    %107 = vmatpush1.xpose.msra.mxu0 0.0
    %108 = vmatprep.subr.mxu0 0.0
    %109 = vmatpush1.xpose.msra.mxu0 0.0
    %110 = vmatprep.subr.mxu0 0.0
    %111 = vmatpush1.xpose.msra.mxu0 0.0
    %112 = vmatprep.subr.mxu0 0.0
    %113 = vmatpush1.xpose.msra.mxu0 0.0
    %114 = vmatprep.subr.mxu0 0.0
    %115 = vmatpush1.xpose.msra.mxu0 0.0
    %116 = vmatprep.subr.mxu0 0.0
    %117 = vmatpush1.xpose.msra.mxu0 0.0
    %118 = vmatprep.subr.mxu0 0.0
    %119 = vmatpush1.xpose.msra.mxu0 0.0
    %120 = vmatprep.subr.mxu0 0.0
    %121 = vmatpush1.xpose.msra.mxu0 0.0
    %122 = vmatprep.subr.mxu0 0.0
    %123 = vmatpush1.xpose.msra.mxu0 0.0
    %124 = vmatprep.subr.mxu0 0.0
    %125 = vmatpush1.xpose.msra.mxu0 0.0
    %126 = vmatprep.subr.mxu0 0.0
    %127 = vmatpush1.xpose.msra.mxu0 0.0
    %128 = vmatprep.subr.mxu0 0.0
    %129 = vmatpush1.xpose.msra.mxu0 0.0
    %130 = vmatprep.subr.mxu0 0.0
    %131 = vmatpush1.xpose.msra.mxu0 0.0
    %132 = vmatprep.subr.mxu0 0.0
    %133 = vmatpush1.xpose.msra.mxu0 0.0
    %134 = vmatprep.subr.mxu0 0.0
    %135 = vmatpush1.xpose.msra.mxu0 0.0
    %136 = vmatprep.subr.mxu0 0.0
    %137 = vmatpush1.xpose.msra.mxu0 0.0
    %138 = vmatprep.subr.mxu0 0.0
    %139 = vmatpush1.xpose.msra.mxu0 0.0
    %140 = vmatprep.mubr.f32.mxu0 0.0
    %141 = vmatmul.mubr.f32.gmra.mrb[0].mxu0 %v74
    %v142 = vpop.f32.mrb[0].mxu0
    %v143 = vadd.f32 0.0, %v142
    %v144 = vpop.f32.mrb[0].mxu0
    %145 = vdwg.mxu0
    %v147 = vsel %vm72, %v42, 0
    %149 = vmatprep.subr.mxu0 0.0
    %150 = vmatpush1.xpose.msra.mxu0 %v147
    %151 = vmatprep.subr.mxu0 0.0
    %152 = vmatpush1.xpose.msra.mxu0 0.0
    %153 = vmatprep.subr.mxu0 0.0
    %154 = vmatpush1.xpose.msra.mxu0 0.0
    %155 = vmatprep.subr.mxu0 0.0
    %156 = vmatpush1.xpose.msra.mxu0 0.0
    %157 = vmatprep.subr.mxu0 0.0
    %158 = vmatpush1.xpose.msra.mxu0 0.0
    %159 = vmatprep.subr.mxu0 0.0
    %160 = vmatpush1.xpose.msra.mxu0 0.0
    %161 = vmatprep.subr.mxu0 0.0
    %162 = vmatpush1.xpose.msra.mxu0 0.0
    %163 = vmatprep.subr.mxu0 0.0
    %164 = vmatpush1.xpose.msra.mxu0 0.0
    %165 = vmatprep.subr.mxu0 0.0
    %166 = vmatpush1.xpose.msra.mxu0 0.0
    %167 = vmatprep.subr.mxu0 0.0
    %168 = vmatpush1.xpose.msra.mxu0 0.0
    %169 = vmatprep.subr.mxu0 0.0
    %170 = vmatpush1.xpose.msra.mxu0 0.0
    %171 = vmatprep.subr.mxu0 0.0
    %172 = vmatpush1.xpose.msra.mxu0 0.0
    %173 = vmatprep.subr.mxu0 0.0
    %174 = vmatpush1.xpose.msra.mxu0 0.0
    %175 = vmatprep.subr.mxu0 0.0
    %176 = vmatpush1.xpose.msra.mxu0 0.0
    %177 = vmatprep.subr.mxu0 0.0
    %178 = vmatpush1.xpose.msra.mxu0 0.0
    %179 = vmatprep.subr.mxu0 0.0
    %180 = vmatpush1.xpose.msra.mxu0 0.0
    %181 = vmatprep.subr.mxu0 0.0
    %182 = vmatpush1.xpose.msra.mxu0 0.0
    %183 = vmatprep.subr.mxu0 0.0
    %184 = vmatpush1.xpose.msra.mxu0 0.0
    %185 = vmatprep.subr.mxu0 0.0
    %186 = vmatpush1.xpose.msra.mxu0 0.0
    %187 = vmatprep.subr.mxu0 0.0
    %188 = vmatpush1.xpose.msra.mxu0 0.0
    %189 = vmatprep.subr.mxu0 0.0
    %190 = vmatpush1.xpose.msra.mxu0 0.0
    %191 = vmatprep.subr.mxu0 0.0
    %192 = vmatpush1.xpose.msra.mxu0 0.0
    %193 = vmatprep.subr.mxu0 0.0
    %194 = vmatpush1.xpose.msra.mxu0 0.0
    %195 = vmatprep.subr.mxu0 0.0
    %196 = vmatpush1.xpose.msra.mxu0 0.0
    %197 = vmatprep.subr.mxu0 0.0
    %198 = vmatpush1.xpose.msra.mxu0 0.0
    %199 = vmatprep.subr.mxu0 0.0
    %200 = vmatpush1.xpose.msra.mxu0 0.0
    %201 = vmatprep.subr.mxu0 0.0
    %202 = vmatpush1.xpose.msra.mxu0 0.0
    %203 = vmatprep.subr.mxu0 0.0
    %204 = vmatpush1.xpose.msra.mxu0 0.0
    %205 = vmatprep.subr.mxu0 0.0
    %206 = vmatpush1.xpose.msra.mxu0 0.0
    %207 = vmatprep.subr.mxu0 0.0
    %208 = vmatpush1.xpose.msra.mxu0 0.0
    %209 = vmatprep.subr.mxu0 0.0
    %210 = vmatpush1.xpose.msra.mxu0 0.0
    %211 = vmatprep.subr.mxu0 0.0
    %212 = vmatpush1.xpose.msra.mxu0 0.0
    %213 = vmatprep.mubr.f32.mxu0 0.0
    %214 = vmatmul.mubr.f32.gmra.mrb[0].mxu0 %v147
    %v215 = vpop.f32.mrb[0].mxu0
    %v216 = vadd.f32 0.0, %v215
    %v217 = vpop.f32.mrb[0].mxu0
    %218 = vdwg.mxu0
    %v220 = vsel %vm72, %v43, 0
    %222 = vmatprep.subr.mxu0 0.0
    %223 = vmatpush1.xpose.msra.mxu0 %v220
    %224 = vmatprep.subr.mxu0 0.0
    %225 = vmatpush1.xpose.msra.mxu0 0.0
    %226 = vmatprep.subr.mxu0 0.0
    %227 = vmatpush1.xpose.msra.mxu0 0.0
    %228 = vmatprep.subr.mxu0 0.0
    %229 = vmatpush1.xpose.msra.mxu0 0.0
    %230 = vmatprep.subr.mxu0 0.0
    %231 = vmatpush1.xpose.msra.mxu0 0.0
    %232 = vmatprep.subr.mxu0 0.0
    %233 = vmatpush1.xpose.msra.mxu0 0.0
    %234 = vmatprep.subr.mxu0 0.0
    %235 = vmatpush1.xpose.msra.mxu0 0.0
    %236 = vmatprep.subr.mxu0 0.0
    %237 = vmatpush1.xpose.msra.mxu0 0.0
    %238 = vmatprep.subr.mxu0 0.0
    %239 = vmatpush1.xpose.msra.mxu0 0.0
    %240 = vmatprep.subr.mxu0 0.0
    %241 = vmatpush1.xpose.msra.mxu0 0.0
    %242 = vmatprep.subr.mxu0 0.0
    %243 = vmatpush1.xpose.msra.mxu0 0.0
    %244 = vmatprep.subr.mxu0 0.0
    %245 = vmatpush1.xpose.msra.mxu0 0.0
    %246 = vmatprep.subr.mxu0 0.0
    %247 = vmatpush1.xpose.msra.mxu0 0.0
    %248 = vmatprep.subr.mxu0 0.0
    %249 = vmatpush1.xpose.msra.mxu0 0.0
    %250 = vmatprep.subr.mxu0 0.0
    %251 = vmatpush1.xpose.msra.mxu0 0.0
    %252 = vmatprep.subr.mxu0 0.0
    %253 = vmatpush1.xpose.msra.mxu0 0.0
    %254 = vmatprep.subr.mxu0 0.0
    %255 = vmatpush1.xpose.msra.mxu0 0.0
    %256 = vmatprep.subr.mxu0 0.0
    %257 = vmatpush1.xpose.msra.mxu0 0.0
    %258 = vmatprep.subr.mxu0 0.0
    %259 = vmatpush1.xpose.msra.mxu0 0.0
    %260 = vmatprep.subr.mxu0 0.0
    %261 = vmatpush1.xpose.msra.mxu0 0.0
    %262 = vmatprep.subr.mxu0 0.0
    %263 = vmatpush1.xpose.msra.mxu0 0.0
    %264 = vmatprep.subr.mxu0 0.0
    %265 = vmatpush1.xpose.msra.mxu0 0.0
    %266 = vmatprep.subr.mxu0 0.0
    %267 = vmatpush1.xpose.msra.mxu0 0.0
    %268 = vmatprep.subr.mxu0 0.0
    %269 = vmatpush1.xpose.msra.mxu0 0.0
    %270 = vmatprep.subr.mxu0 0.0
    %271 = vmatpush1.xpose.msra.mxu0 0.0
    %272 = vmatprep.subr.mxu0 0.0
    %273 = vmatpush1.xpose.msra.mxu0 0.0
    %274 = vmatprep.subr.mxu0 0.0
    %275 = vmatpush1.xpose.msra.mxu0 0.0
    %276 = vmatprep.subr.mxu0 0.0
    %277 = vmatpush1.xpose.msra.mxu0 0.0
    %278 = vmatprep.subr.mxu0 0.0
    %279 = vmatpush1.xpose.msra.mxu0 0.0
    %280 = vmatprep.subr.mxu0 0.0
    %281 = vmatpush1.xpose.msra.mxu0 0.0
    %282 = vmatprep.subr.mxu0 0.0
    %283 = vmatpush1.xpose.msra.mxu0 0.0
    %284 = vmatprep.subr.mxu0 0.0
    %285 = vmatpush1.xpose.msra.mxu0 0.0
    %286 = vmatprep.mubr.f32.mxu0 0.0
    %287 = vmatmul.mubr.f32.gmra.mrb[0].mxu0 %v220
    %v288 = vpop.f32.mrb[0].mxu0
    %v289 = vadd.f32 0.0, %v288
    %v290 = vpop.f32.mrb[0].mxu0
    %291 = vdwg.mxu0
    %v293 = vsel %vm72, %v44, 0
    %295 = vmatprep.subr.mxu0 0.0
    %296 = vmatpush1.xpose.msra.mxu0 %v293
    %297 = vmatprep.subr.mxu0 0.0
    %298 = vmatpush1.xpose.msra.mxu0 0.0
    %299 = vmatprep.subr.mxu0 0.0
    %300 = vmatpush1.xpose.msra.mxu0 0.0
    %301 = vmatprep.subr.mxu0 0.0
    %302 = vmatpush1.xpose.msra.mxu0 0.0
    %303 = vmatprep.subr.mxu0 0.0
    %304 = vmatpush1.xpose.msra.mxu0 0.0
    %305 = vmatprep.subr.mxu0 0.0
    %306 = vmatpush1.xpose.msra.mxu0 0.0
    %307 = vmatprep.subr.mxu0 0.0
    %308 = vmatpush1.xpose.msra.mxu0 0.0
    %309 = vmatprep.subr.mxu0 0.0
    %310 = vmatpush1.xpose.msra.mxu0 0.0
    %311 = vmatprep.subr.mxu0 0.0
    %312 = vmatpush1.xpose.msra.mxu0 0.0
    %313 = vmatprep.subr.mxu0 0.0
    %314 = vmatpush1.xpose.msra.mxu0 0.0
    %315 = vmatprep.subr.mxu0 0.0
    %316 = vmatpush1.xpose.msra.mxu0 0.0
    %317 = vmatprep.subr.mxu0 0.0
    %318 = vmatpush1.xpose.msra.mxu0 0.0
    %319 = vmatprep.subr.mxu0 0.0
    %320 = vmatpush1.xpose.msra.mxu0 0.0
    %321 = vmatprep.subr.mxu0 0.0
    %322 = vmatpush1.xpose.msra.mxu0 0.0
    %323 = vmatprep.subr.mxu0 0.0
    %324 = vmatpush1.xpose.msra.mxu0 0.0
    %325 = vmatprep.subr.mxu0 0.0
    %326 = vmatpush1.xpose.msra.mxu0 0.0
    %327 = vmatprep.subr.mxu0 0.0
    %328 = vmatpush1.xpose.msra.mxu0 0.0
    %329 = vmatprep.subr.mxu0 0.0
    %330 = vmatpush1.xpose.msra.mxu0 0.0
    %331 = vmatprep.subr.mxu0 0.0
    %332 = vmatpush1.xpose.msra.mxu0 0.0
    %333 = vmatprep.subr.mxu0 0.0
    %334 = vmatpush1.xpose.msra.mxu0 0.0
    %335 = vmatprep.subr.mxu0 0.0
    %336 = vmatpush1.xpose.msra.mxu0 0.0
    %337 = vmatprep.subr.mxu0 0.0
    %338 = vmatpush1.xpose.msra.mxu0 0.0
    %339 = vmatprep.subr.mxu0 0.0
    %340 = vmatpush1.xpose.msra.mxu0 0.0
    %341 = vmatprep.subr.mxu0 0.0
    %342 = vmatpush1.xpose.msra.mxu0 0.0
    %343 = vmatprep.subr.mxu0 0.0
    %344 = vmatpush1.xpose.msra.mxu0 0.0
    %345 = vmatprep.subr.mxu0 0.0
    %346 = vmatpush1.xpose.msra.mxu0 0.0
    %347 = vmatprep.subr.mxu0 0.0
    %348 = vmatpush1.xpose.msra.mxu0 0.0
    %349 = vmatprep.subr.mxu0 0.0
    %350 = vmatpush1.xpose.msra.mxu0 0.0
    %351 = vmatprep.subr.mxu0 0.0
    %352 = vmatpush1.xpose.msra.mxu0 0.0
    %353 = vmatprep.subr.mxu0 0.0
    %354 = vmatpush1.xpose.msra.mxu0 0.0
    %355 = vmatprep.subr.mxu0 0.0
    %356 = vmatpush1.xpose.msra.mxu0 0.0
    %357 = vmatprep.subr.mxu0 0.0
    %358 = vmatpush1.xpose.msra.mxu0 0.0
    %359 = vmatprep.mubr.f32.mxu0 0.0
    %360 = vmatmul.mubr.f32.gmra.mrb[0].mxu0 %v293
    %v361 = vpop.f32.mrb[0].mxu0
    %v362 = vadd.f32 0.0, %v361
    %v363 = vpop.f32.mrb[0].mxu0
    %364 = vdwg.mxu0
    %vm365 = vcmp.eq.s32.totalorder %v47, %v52
    %v366 = vsel %vm365, 1, 0
    %v367 = vcvt.s32.f32 %v366
    %v368 = vsub.f32 %v143, %v367
    %v369 = vsub.f32 %v216, %v367
    %v370 = vsub.f32 %v289, %v367
    %v371 = vsub.f32 %v362, %v367
    %v372 = vmul.f32 %v368, %v368
    %v373 = vmul.f32 %v369, %v369
    %v374 = vmul.f32 %v370, %v370
    %v375 = vmul.f32 %v371, %v371
    %v376 = vsel %vm72, %v372, 0.0
    %377 = vadd.xlane.f32.xlu0 %v376
    %v378 = vpop.xlane.xlu0 %377
    %v379 = vsel %vm72, %v373, 0.0
    %380 = vadd.xlane.f32.xlu0 %v379
    %v381 = vpop.xlane.xlu0 %380
    %v382 = vsel %vm72, %v374, 0.0
    %383 = vadd.xlane.f32.xlu0 %v382
    %v384 = vpop.xlane.xlu0 %383
    %v385 = vsel %vm72, %v375, 0.0
    %386 = vadd.xlane.f32.xlu0 %v385
    %v387 = vpop.xlane.xlu0 %386
    %v392 = vlaneseq
    %v393 = vshrl.u32 %v392, 7
    %v394 = vsub.s32 %v52, %v393
    %v395 = vrot.slane %v378, %v394
    %v396 = vlaneseq
    %v397 = vshrl.u32 %v396, 7
    %v398 = vsub.s32 %v52, %v397
    %v399 = vrot.slane %v381, %v398
    %v400 = vlaneseq
    %v401 = vshrl.u32 %v400, 7
    %v402 = vsub.s32 %v52, %v401
    %v403 = vrot.slane %v384, %v402
    %v404 = vlaneseq
    %v405 = vshrl.u32 %v404, 7
    %v406 = vsub.s32 %v52, %v405
    %v407 = vrot.slane %v387, %v406
    %vm408 = vcmask 1041409
    %v409 = vsel %vm408, %v399, %v395
    %vm410 = vcmask 1042434
    %v411 = vsel %vm410, %v403, %v409
    %vm412 = vcmask 1043459
    %v413 = vsel %vm412, %v407, %v411
    %vm415 = vcmask 60416
    %v416 = vsel %vm415, %v413, 0.0
    %417 = vadd.xlane.f32.xlu0 %v416
    %v418 = vpop.xlane.xlu0 %417
    %v419 = vrsqrt.pop %v418
    %v420 = vmul.f32 %v418, %v419
    %vm421 = vcmp.eq.f32.partialorder %v418, inf
    %v422 = vsel %vm421, %v418, %v420
    %vm423 = vcmp.eq.f32.partialorder %v418, 0.0
    %v424 = vand.u32 %v418, 2147483648
    %v425 = vsel %vm423, %v424, %v422
    %v426 = vsel %vm50, %v425, 0.0
    %vm427 = vcmask 3072
    %v428 = vsel %vm427, %v426, 0.0
    %429 = vadd.xlane.f32.xlu0 %v428
    %v430 = vpop.xlane.xlu0 %429
    %v431 = vrot.slane %v430, 4
    %v432 = vadd.f32 %v430, %v431
    %v433 = vrot.slane %v432, 2
    %v434 = vadd.f32 %v432, %v433
    %v435 = vrot.slane %v434, 1
    %v436 = vadd.f32 %v434, %v435
    %s437 = vtos %v436
    %s438 = sld [smem:[#allocation2]]
    %s439 = sld [smem:[#allocation3]]
    %s440 = smul.f32 %s439, %s437
    %s441 = ssub.f32 %s440, %s71
    %s442 = sadd.f32 %s438, %s441
    %s443 = scalar_lea.smem [#allocation2], 0
    %444 = sst [smem:[%s443]] %s442
    // Predicated region
    $region26: #{tpu_custom_call.1} parent=1 // pred_check
      %p445 = pneg %p33
    $region27: #{tpu_custom_call.1} parent=1 // pred_check_branch
      %447 = sbr.rel (%p445) target = $region29
    $region28: #{tpu_custom_call.1} parent=1 // pred_region
      %s448 = sld [smem:[#allocation2]]
      %v449 = vrcp.pop 4.0
      %s450 = vtos %v449
      %s451 = smul.f32 %s448, %s450
      %s452 = scalar_lea.smem [#allocation7], 0
      %453 = sst [smem:[%s452]] %s451
    $region29: #{tpu_custom_call.1} parent=1 // pred_fallthru
      _
    // Predicated region
    $region30: #{tpu_custom_call.1} parent=1 // pred_check
      _
    $region31: #{tpu_custom_call.1} parent=1 // pred_check_branch
      %455 = sbr.rel (0) target = $region33
    $region32: #{tpu_custom_call.1} parent=1 // pred_region
      %s457 = ssub.s32 16, 16
      %458 = vsyncadd [#allocation6], %s457
      %461 = dma.smem_to_hbm [#allocation7], 16, %s4, [#allocation6]
    $region33: #{tpu_custom_call.1} parent=1 // pred_fallthru
      _
    // Predicated region
    $region34: #{tpu_custom_call.1} parent=1 // pred_check
      _
    $region35: #{tpu_custom_call.1} parent=1 // pred_check_branch
      %463 = sbr.rel (0) target = $region37
    $region36: #{tpu_custom_call.1} parent=1 // pred_region
      %464 = dma.done [#allocation6], 16
    $region37: #{tpu_custom_call.1} parent=1 // pred_fallthru
      _
    %465 = sfence
    %466 = vsyncpa [#allocation5], 1
    %467 = vsyncpa [#allocation6], 1

</llo_original>
